<compile_context>
chip_gen: v5e
topology: v5e:2x2
jax: 0.10.0
libtpu: 0.0.40
codegen_flags: <defaults>
</compile_context>

<pallas_src>
import functools
import math

import jax
import jax.numpy as jnp
import numpy as np
from jax.experimental import pallas as pl
from jax.experimental.pallas import tpu as pltpu


def _round_up(x, m):
    return -(-x // m) * m


# -----------------------------------------------------------------------------
# Fused Pallas kernel: both output-attention branches for a batch tile
# -----------------------------------------------------------------------------
def _fused_output_attn_kernel(hg_ref, hs_ref, wl_ref, wg_ref, mask_ref, o_ref,
                              *, n_head, dhp):
    # hg_ref  : (Bt, Sp, D)      bf16  h_graph (q-input and k/v, "local" branch)
    # hs_ref  : (Bt, Sp, D)      bf16  h_seq   (q-input and k/v, "global" branch)
    # wl_ref  : (D, H*Dhp + Dhp) bf16  [Wq_local (head-padded) | Wk_local (padded)]
    # wg_ref  : (D, H*Dhp + Dhp) bf16  same for the global branch
    # mask_ref: (Bt, 1, Sp)      f32   1.0 = valid key position, 0.0 = padded
    # o_ref   : (Bt, Sp, 2*D)    f32   [l | g] concatenated on the last axis
    Bt, Sp, D = hg_ref.shape
    qw = n_head * dhp
    neg = jnp.float32(-jnp.finfo(jnp.float32).max)   # matches -finfo(q.dtype).max
    valid = mask_ref[...] > 0.5                       # (Bt, 1, Sp)

    def branch(h_bf, w_ref):
        # q/k projection: ONE bf16 MXU matmul on the flattened rows, f32 accumulate.
        qk = jnp.dot(h_bf.reshape(Bt * Sp, D), w_ref[...],
                     preferred_element_type=jnp.float32)       # (Bt*Sp, qw+dhp) f32
        q = qk[:, :qw].reshape(Bt, Sp, qw)                     # lane slice @ 128-mult
        k = qk[:, qw:].reshape(Bt, Sp, dhp)
        # Heads -> matmul M axis. All head slices are 128-lane aligned (Dh padded
        # to Dhp), concatenated along the sublane axis at Sp-aligned offsets:
        # one sim matmul with M = H*Sp instead of H small ones, and one single
        # (potential) implicit k transpose per branch.
        qcat = jnp.concatenate(
            [q[:, :, h * dhp:(h + 1) * dhp] for h in range(n_head)], axis=1)
        sim = jnp.einsum('bid,bjd->bij',
                         qcat.astype(jnp.bfloat16), k.astype(jnp.bfloat16),
                         preferred_element_type=jnp.float32)   # (Bt, H*Sp, Sp)
        # Finite where-replacement mask (reference semantics): fully-masked
        # (batch/seq padded) rows stay finite after the row-max subtraction.
        sim = jnp.where(valid, sim, neg)
        # Stable softmax, kept in f32 (v5e-safe), exact division per review.
        sim = sim - jnp.max(sim, axis=-1, keepdims=True)
        p = jnp.exp(sim)
        p = p / jnp.sum(p, axis=-1, keepdims=True)
        # v is shared across heads: sum_h attn_h @ v == (sum_h attn_h) @ v.
        acc = p[:, 0:Sp, :]
        for h in range(1, n_head):                             # aligned VPU adds
            acc = acc + p[:, h * Sp:(h + 1) * Sp, :]
        return jnp.einsum('bij,bjd->bid', acc.astype(jnp.bfloat16), h_bf,
                          preferred_element_type=jnp.float32)  # (Bt, Sp, D) f32

    o_l = branch(hg_ref[...], wl_ref)
    o_g = branch(hs_ref[...], wg_ref)
    # single lane-dense store of the whole [l | g] slab
    o_ref[...] = jnp.concatenate([o_l, o_g], axis=-1).astype(o_ref.dtype)


def fused_output_attention(h_graph, h_seq, wq_l, wk_l, wq_g, wk_g, mask_bool,
                           *, n_head, block_b=8):
    """Both attention branches in one pallas_call.

    h_graph, h_seq: (B, S, D) f32; wq_*: (D, D); wk_*: (D, D//n_head);
    mask_bool: (B, S) bool.  Returns (l, g), each (B, S, D) float32.
    """
    B, S, D = h_graph.shape
    assert D % n_head == 0, "hidden_dim must be divisible by n_head"
    dh = D // n_head
    dhp = _round_up(dh, 128)          # head dim padded to a 128-lane multiple
    qw = n_head * dhp

    # ---- pad S to a sublane multiple so in-kernel sublane slicing is aligned
    Sp = _round_up(S, 8)
    if Sp != S:
        ps = Sp - S
        h_graph = jnp.pad(h_graph, ((0, 0), (0, ps), (0, 0)))
        h_seq = jnp.pad(h_seq, ((0, 0), (0, ps), (0, 0)))
        mask_bool = jnp.pad(mask_bool, ((0, 0), (0, ps)))

    # ---- batch tile: >= 2 grid blocks when B >= 2 (v7x dual TensorCore) and
    # shrunk against a crude VMEM estimate (v7x has 64 MiB physical VMEM).
    bt = max(1, min(block_b, -(-B // 2)))

    def est_vmem(bt_):
        io = (2 * 2 * bt_ * Sp * D * 2          # hg/hs bf16, double-buffered
              + 2 * bt_ * Sp * 4                 # mask f32, double-buffered
              + 2 * 2 * D * (qw + dhp) * 2       # wl/wg bf16, double-buffered
              + 2 * bt_ * Sp * 2 * D * 4)        # output f32, double-buffered
        live = (bt_ * Sp * (qw + dhp) * 4        # qk projection
                + 3 * bt_ * n_head * Sp * Sp * 4 # sim / p / temporaries
                + bt_ * Sp * Sp * 4              # acc
                + bt_ * Sp * 2 * D * 4)          # o_l | o_g
        return io + live

    while bt > 1 and est_vmem(bt) > 40 * 1024 * 1024:
        bt //= 2

    n_blk = -(-B // bt)
    Bp = n_blk * bt
    if Bp != B:
        pb = Bp - B
        # padded batch rows are fully masked -> finite outputs, sliced off below
        h_graph = jnp.pad(h_graph, ((0, pb), (0, 0), (0, 0)))
        h_seq = jnp.pad(h_seq, ((0, pb), (0, 0), (0, 0)))
        mask_bool = jnp.pad(mask_bool, ((0, pb), (0, 0)))

    # ---- bf16 MXU operands pre-cast in the wrapper (halves the HBM DMA bytes)
    hg = h_graph.astype(jnp.bfloat16)
    hs = h_seq.astype(jnp.bfloat16)

    def pack_w(wq, wk):
        # zero-pad each head's Dh columns to Dhp (sims unchanged: padded q/k are 0)
        wq_p = jnp.pad(wq.reshape(D, n_head, dh),
                       ((0, 0), (0, 0), (0, dhp - dh))).reshape(D, qw)
        wk_p = jnp.pad(wk, ((0, 0), (0, dhp - dh)))
        return jnp.concatenate([wq_p, wk_p], axis=1).astype(jnp.bfloat16)

    wl = pack_w(wq_l, wk_l)                                   # (D, qw + dhp)
    wg = pack_w(wq_g, wk_g)
    mask_f = mask_bool[:, None, :].astype(jnp.float32)        # (Bp, 1, Sp)

    kernel = functools.partial(_fused_output_attn_kernel, n_head=n_head, dhp=dhp)
    out = pl.pallas_call(
        kernel,
        out_shape=jax.ShapeDtypeStruct((Bp, Sp, 2 * D), jnp.float32),
        grid=(n_blk,),
        in_specs=[
            pl.BlockSpec((bt, Sp, D), lambda b: (b, 0, 0)),
            pl.BlockSpec((bt, Sp, D), lambda b: (b, 0, 0)),
            # constant index_map -> weights are only DMA'd for the first step
            pl.BlockSpec((D, qw + dhp), lambda b: (0, 0)),
            pl.BlockSpec((D, qw + dhp), lambda b: (0, 0)),
            pl.BlockSpec((bt, 1, Sp), lambda b: (b, 0, 0)),
        ],
        out_specs=pl.BlockSpec((bt, Sp, 2 * D), lambda b: (b, 0, 0)),
        compiler_params=pltpu.CompilerParams(
            dimension_semantics=("parallel",),
            vmem_limit_bytes=48 * 1024 * 1024),
    )(hg, hs, wl, wg, mask_f)

    l = out[:B, :S, :D]
    g = out[:B, :S, D:]
    return l, g


# -----------------------------------------------------------------------------
# Pure-JAX reference (for verification only; f32 throughout, like PyTorch)
# -----------------------------------------------------------------------------
def _ref_masked_mha_sum(hq, hk, wq, wk, mask_b, *, n_head):
    B, S, D = hq.shape
    dh = D // n_head
    q = hq @ wq                                              # (B, S, D)
    q = q.reshape(B, S, n_head, dh).transpose(0, 2, 1, 3)    # (B, H, S, dh)
    k = hk @ wk                                              # (B, S, dh)
    sim = jnp.einsum('bhid,bjd->bhij', q, k)
    neg = -jnp.finfo(jnp.float32).max
    sim = jnp.where(mask_b[:, None, None, :], sim, neg)
    sim = sim - jnp.max(sim, axis=-1, keepdims=True)
    attn = jnp.exp(sim)
    attn = attn / jnp.sum(attn, axis=-1, keepdims=True)
    return jnp.einsum('bhij,bjd->bid', attn, hk)


# -----------------------------------------------------------------------------
# FAPAT forward (n_iter = 0, single SEQUENCE key, eval mode)
# -----------------------------------------------------------------------------
def fapat_forward(params, input_ids, item_ids, mask_bool, *, n_head):
    emb = params['embedding']                  # (n_nodes, D)
    h_seq = emb[input_ids]                     # (B, S, D) == h_seqs[SEQUENCE]
    h_graph = emb[item_ids]                    # (B, S, D) == h_graphs[SEQUENCE]
    # n_iter == 0: h_local = h_graph, h_global = h_seq (mean over the one key)
    l, g = fused_output_attention(
        h_graph, h_seq,
        params['local_to_q'], params['local_to_k'],
        params['global_to_q'], params['global_to_k'],
        mask_bool, n_head=n_head)
    # dropout is identity in eval mode
    return l, g[:, 1:-1], g[:, -1]


def fapat_forward_ref(params, input_ids, item_ids, mask_bool, *, n_head):
    emb = params['embedding']
    h_seq = emb[input_ids]
    h_graph = emb[item_ids]
    l = _ref_masked_mha_sum(h_graph, h_graph,
                            params['local_to_q'], params['local_to_k'],
                            mask_bool, n_head=n_head)
    g = _ref_masked_mha_sum(h_seq, h_seq,
                            params['global_to_q'], params['global_to_k'],
                            mask_bool, n_head=n_head)
    return l, g[:, 1:-1], g[:, -1]


# -----------------------------------------------------------------------------
# Deterministic parameter init (matches reset_parameters: U(-1/sqrt(D), 1/sqrt(D)))
# -----------------------------------------------------------------------------
def init_params(key, *, n_nodes, dim, n_head):
    stdv = 1.0 / math.sqrt(dim)
    dh = dim // n_head
    ks = jax.random.split(key, 5)
    u = lambda k, shape: jax.random.uniform(k, shape, jnp.float32, -stdv, stdv)
    return {
        'embedding': u(ks[0], (n_nodes, dim)),
        'local_to_q': u(ks[1], (dim, dim)),      # stored as [D_in, D_out]
        'local_to_k': u(ks[2], (dim, dh)),
        'global_to_q': u(ks[3], (dim, dim)),
        'global_to_k': u(ks[4], (dim, dh)),
    }


if __name__ == "__main__":
    B, S, D, H = 2, 8, 32, 2
    N_NODES = 50

    key = jax.random.PRNGKey(0)
    kp, ki, kt = jax.random.split(key, 3)
    params = init_params(kp, n_nodes=N_NODES, dim=D, n_head=H)

    input_ids = jax.random.randint(ki, (B, S), 1, N_NODES, dtype=jnp.int32)
    item_ids = jax.random.randint(kt, (B, S), 1, N_NODES, dtype=jnp.int32)
    # mask: first 6 positions valid in batch 0, first 4 in batch 1
    mask_bool = jnp.array(
        [[True] * 6 + [False] * 2,
         [True] * 4 + [False] * 4], dtype=jnp.bool_)
    # zero out padded ids (padding_idx semantics on the id side)
    input_ids = jnp.where(mask_bool, input_ids, 0)
    item_ids = jnp.where(mask_bool, item_ids, 0)

    out = fapat_forward(params, input_ids, item_ids, mask_bool, n_head=H)
    out = jax.block_until_ready(out)

    ref = fapat_forward_ref(params, input_ids, item_ids, mask_bool, n_head=H)
    ref = jax.block_until_ready(ref)

    # Tolerance reflects bf16 MXU operands (per perf review: cast matmul inputs
    # to bf16, accumulate in f32). Softmax uses exact division again, so the
    # residual error is purely the bf16 rounding of matmul operands.
    for o, r in zip(out, ref):
        np.testing.assert_allclose(np.asarray(o), np.asarray(r),
                                   rtol=2e-2, atol=5e-3)

    print("KERNEL_OK")
</pallas_src>

<mosaic_0001>
module attributes {stable_mosaic.version = 11 : i64} {
  func.func @_fused_output_attn_kernel(%arg0: i32, %arg1: memref<1x8x32xbf16, #tpu.memory_space<vmem>>, %arg2: memref<1x8x32xbf16, #tpu.memory_space<vmem>>, %arg3: memref<32x384xbf16, #tpu.memory_space<vmem>>, %arg4: memref<32x384xbf16, #tpu.memory_space<vmem>>, %arg5: memref<1x1x8xf32, #tpu.memory_space<vmem>>, %arg6: memref<1x8x64xf32, #tpu.memory_space<vmem>>) attributes {dimension_semantics = [#tpu.dimension_semantics<parallel>], iteration_bounds = array<i64: 2>, scalar_prefetch = 0 : i64, scratch_operands = 0 : i64, tpu.core_type = #tpu.core_type<tc>, window_params = [{transform_indices = @transform_0, window_bounds = array<i64: 1, 8, 32>}, {transform_indices = @transform_1, window_bounds = array<i64: 1, 8, 32>}, {pipeline_mode = #tpu.pipeline_mode<synchronous>, transform_indices = @transform_2, window_bounds = array<i64: 32, 384>}, {pipeline_mode = #tpu.pipeline_mode<synchronous>, transform_indices = @transform_3, window_bounds = array<i64: 32, 384>}, {transform_indices = @transform_4, window_bounds = array<i64: 1, 1, 8>}, {transform_indices = @transform_5, window_bounds = array<i64: 1, 8, 64>}]} {
    %c0 = arith.constant 0 : index
    %c0_0 = arith.constant 0 : index
    %c0_1 = arith.constant 0 : index
    %0 = vector.load %arg5[%c0, %c0_0, %c0_1] : memref<1x1x8xf32, #tpu.memory_space<vmem>>, vector<1x1x8xf32>
    %cst = arith.constant 5.000000e-01 : f32
    %1 = vector.broadcast %cst : f32 to vector<1x1x8xf32>
    %2 = arith.cmpf ogt, %0, %1 : vector<1x1x8xf32>
    %c0_2 = arith.constant 0 : index
    %c0_3 = arith.constant 0 : index
    %c0_4 = arith.constant 0 : index
    %3 = vector.load %arg1[%c0_2, %c0_3, %c0_4] : memref<1x8x32xbf16, #tpu.memory_space<vmem>>, vector<1x8x32xbf16>
    %4 = vector.shape_cast %3 : vector<1x8x32xbf16> to vector<8x32xbf16>
    %c0_5 = arith.constant 0 : index
    %c0_6 = arith.constant 0 : index
    %5 = vector.load %arg3[%c0_5, %c0_6] : memref<32x384xbf16, #tpu.memory_space<vmem>>, vector<32x384xbf16>
    %cst_7 = arith.constant dense<0.000000e+00> : vector<8x384xf32>
    %6 = tpu.matmul %4, %5, %cst_7 {dimension_numbers = #tpu.dot_dimension_numbers<[1], [0], [0], [1], [0, 0, 1, 1], [], []>} : vector<8x32xbf16>, vector<32x384xbf16>, vector<8x384xf32> -> vector<8x384xf32>
    %7 = vector.extract_strided_slice %6 {offsets = [0, 0], sizes = [8, 256], strides = [1, 1]} : vector<8x384xf32> to vector<8x256xf32>
    %8 = vector.shape_cast %7 : vector<8x256xf32> to vector<1x8x256xf32>
    %9 = vector.extract_strided_slice %6 {offsets = [0, 256], sizes = [8, 128], strides = [1, 1]} : vector<8x384xf32> to vector<8x128xf32>
    %10 = vector.shape_cast %9 : vector<8x128xf32> to vector<1x8x128xf32>
    %11 = vector.extract_strided_slice %8 {offsets = [0, 0, 0], sizes = [1, 8, 128], strides = [1, 1, 1]} : vector<1x8x256xf32> to vector<1x8x128xf32>
    %12 = vector.extract_strided_slice %8 {offsets = [0, 0, 128], sizes = [1, 8, 128], strides = [1, 1, 1]} : vector<1x8x256xf32> to vector<1x8x128xf32>
    %13 = tpu.concatenate %11, %12 in 1 : vector<1x8x128xf32>, vector<1x8x128xf32> -> vector<1x16x128xf32>
    %14 = arith.truncf %13 : vector<1x16x128xf32> to vector<1x16x128xbf16>
    %15 = arith.truncf %10 : vector<1x8x128xf32> to vector<1x8x128xbf16>
    "tpu.trace_start"() <{level = 10 : i32, message = "bid,bjd->bij"}> : () -> ()
    %cst_8 = arith.constant dense<0.000000e+00> : vector<1x16x8xf32>
    %16 = tpu.matmul %14, %15, %cst_8 {dimension_numbers = #tpu.dot_dimension_numbers<[2], [2], [1], [1], [0, 0, 0, 1, 1, 1], [0], [0]>} : vector<1x16x128xbf16>, vector<1x8x128xbf16>, vector<1x16x8xf32> -> vector<1x16x8xf32>
    %cst_9 = arith.constant -3.40282347E+38 : f32
    "tpu.trace_stop"() : () -> ()
    %17 = vector.shape_cast %2 : vector<1x1x8xi1> to vector<1x1x8xi1>
    %18 = vector.broadcast %17 : vector<1x1x8xi1> to vector<1x16x8xi1>
    %19 = vector.broadcast %cst_9 : f32 to vector<1x16x8xf32>
    %20 = arith.select %18, %16, %19 : vector<1x16x8xi1>, vector<1x16x8xf32>
    %cst_10 = arith.constant dense<0xFF800000> : vector<1x16xf32>
    %21 = vector.multi_reduction <maximumf>, %20, %cst_10 [2] : vector<1x16x8xf32> to vector<1x16xf32>
    %22 = vector.shape_cast %21 : vector<1x16xf32> to vector<1x16x1xf32>
    %23 = vector.broadcast %22 : vector<1x16x1xf32> to vector<1x16x8xf32>
    %24 = arith.subf %20, %23 : vector<1x16x8xf32>
    %25 = math.exp %24 : vector<1x16x8xf32>
    %cst_11 = arith.constant dense<0.000000e+00> : vector<1x16xf32>
    %26 = vector.multi_reduction <add>, %25, %cst_11 [2] : vector<1x16x8xf32> to vector<1x16xf32>
    %27 = vector.shape_cast %26 : vector<1x16xf32> to vector<1x16x1xf32>
    %28 = vector.broadcast %27 : vector<1x16x1xf32> to vector<1x16x8xf32>
    %29 = arith.divf %25, %28 : vector<1x16x8xf32>
    %30 = vector.extract_strided_slice %29 {offsets = [0, 0, 0], sizes = [1, 8, 8], strides = [1, 1, 1]} : vector<1x16x8xf32> to vector<1x8x8xf32>
    %31 = vector.extract_strided_slice %29 {offsets = [0, 8, 0], sizes = [1, 8, 8], strides = [1, 1, 1]} : vector<1x16x8xf32> to vector<1x8x8xf32>
    %32 = arith.addf %30, %31 : vector<1x8x8xf32>
    %33 = arith.truncf %32 : vector<1x8x8xf32> to vector<1x8x8xbf16>
    "tpu.trace_start"() <{level = 10 : i32, message = "bij,bjd->bid"}> : () -> ()
    %cst_12 = arith.constant dense<0.000000e+00> : vector<1x8x32xf32>
    %34 = tpu.matmul %33, %3, %cst_12 {dimension_numbers = #tpu.dot_dimension_numbers<[2], [1], [1], [2], [0, 0, 0, 1, 1, 2], [0], [0]>} : vector<1x8x8xbf16>, vector<1x8x32xbf16>, vector<1x8x32xf32> -> vector<1x8x32xf32>
    "tpu.trace_stop"() : () -> ()
    %c0_13 = arith.constant 0 : index
    %c0_14 = arith.constant 0 : index
    %c0_15 = arith.constant 0 : index
    %35 = vector.load %arg2[%c0_13, %c0_14, %c0_15] : memref<1x8x32xbf16, #tpu.memory_space<vmem>>, vector<1x8x32xbf16>
    %36 = vector.shape_cast %35 : vector<1x8x32xbf16> to vector<8x32xbf16>
    %c0_16 = arith.constant 0 : index
    %c0_17 = arith.constant 0 : index
    %37 = vector.load %arg4[%c0_16, %c0_17] : memref<32x384xbf16, #tpu.memory_space<vmem>>, vector<32x384xbf16>
    %cst_18 = arith.constant dense<0.000000e+00> : vector<8x384xf32>
    %38 = tpu.matmul %36, %37, %cst_18 {dimension_numbers = #tpu.dot_dimension_numbers<[1], [0], [0], [1], [0, 0, 1, 1], [], []>} : vector<8x32xbf16>, vector<32x384xbf16>, vector<8x384xf32> -> vector<8x384xf32>
    %39 = vector.extract_strided_slice %38 {offsets = [0, 0], sizes = [8, 256], strides = [1, 1]} : vector<8x384xf32> to vector<8x256xf32>
    %40 = vector.shape_cast %39 : vector<8x256xf32> to vector<1x8x256xf32>
    %41 = vector.extract_strided_slice %38 {offsets = [0, 256], sizes = [8, 128], strides = [1, 1]} : vector<8x384xf32> to vector<8x128xf32>
    %42 = vector.shape_cast %41 : vector<8x128xf32> to vector<1x8x128xf32>
    %43 = vector.extract_strided_slice %40 {offsets = [0, 0, 0], sizes = [1, 8, 128], strides = [1, 1, 1]} : vector<1x8x256xf32> to vector<1x8x128xf32>
    %44 = vector.extract_strided_slice %40 {offsets = [0, 0, 128], sizes = [1, 8, 128], strides = [1, 1, 1]} : vector<1x8x256xf32> to vector<1x8x128xf32>
    %45 = tpu.concatenate %43, %44 in 1 : vector<1x8x128xf32>, vector<1x8x128xf32> -> vector<1x16x128xf32>
    %46 = arith.truncf %45 : vector<1x16x128xf32> to vector<1x16x128xbf16>
    %47 = arith.truncf %42 : vector<1x8x128xf32> to vector<1x8x128xbf16>
    "tpu.trace_start"() <{level = 10 : i32, message = "bid,bjd->bij"}> : () -> ()
    %cst_19 = arith.constant dense<0.000000e+00> : vector<1x16x8xf32>
    %48 = tpu.matmul %46, %47, %cst_19 {dimension_numbers = #tpu.dot_dimension_numbers<[2], [2], [1], [1], [0, 0, 0, 1, 1, 1], [0], [0]>} : vector<1x16x128xbf16>, vector<1x8x128xbf16>, vector<1x16x8xf32> -> vector<1x16x8xf32>
    %cst_20 = arith.constant -3.40282347E+38 : f32
    "tpu.trace_stop"() : () -> ()
    %49 = vector.shape_cast %2 : vector<1x1x8xi1> to vector<1x1x8xi1>
    %50 = vector.broadcast %49 : vector<1x1x8xi1> to vector<1x16x8xi1>
    %51 = vector.broadcast %cst_20 : f32 to vector<1x16x8xf32>
    %52 = arith.select %50, %48, %51 : vector<1x16x8xi1>, vector<1x16x8xf32>
    %cst_21 = arith.constant dense<0xFF800000> : vector<1x16xf32>
    %53 = vector.multi_reduction <maximumf>, %52, %cst_21 [2] : vector<1x16x8xf32> to vector<1x16xf32>
    %54 = vector.shape_cast %53 : vector<1x16xf32> to vector<1x16x1xf32>
    %55 = vector.broadcast %54 : vector<1x16x1xf32> to vector<1x16x8xf32>
    %56 = arith.subf %52, %55 : vector<1x16x8xf32>
    %57 = math.exp %56 : vector<1x16x8xf32>
    %cst_22 = arith.constant dense<0.000000e+00> : vector<1x16xf32>
    %58 = vector.multi_reduction <add>, %57, %cst_22 [2] : vector<1x16x8xf32> to vector<1x16xf32>
    %59 = vector.shape_cast %58 : vector<1x16xf32> to vector<1x16x1xf32>
    %60 = vector.broadcast %59 : vector<1x16x1xf32> to vector<1x16x8xf32>
    %61 = arith.divf %57, %60 : vector<1x16x8xf32>
    %62 = vector.extract_strided_slice %61 {offsets = [0, 0, 0], sizes = [1, 8, 8], strides = [1, 1, 1]} : vector<1x16x8xf32> to vector<1x8x8xf32>
    %63 = vector.extract_strided_slice %61 {offsets = [0, 8, 0], sizes = [1, 8, 8], strides = [1, 1, 1]} : vector<1x16x8xf32> to vector<1x8x8xf32>
    %64 = arith.addf %62, %63 : vector<1x8x8xf32>
    %65 = arith.truncf %64 : vector<1x8x8xf32> to vector<1x8x8xbf16>
    "tpu.trace_start"() <{level = 10 : i32, message = "bij,bjd->bid"}> : () -> ()
    %cst_23 = arith.constant dense<0.000000e+00> : vector<1x8x32xf32>
    %66 = tpu.matmul %65, %35, %cst_23 {dimension_numbers = #tpu.dot_dimension_numbers<[2], [1], [1], [2], [0, 0, 0, 1, 1, 2], [0], [0]>} : vector<1x8x8xbf16>, vector<1x8x32xbf16>, vector<1x8x32xf32> -> vector<1x8x32xf32>
    "tpu.trace_stop"() : () -> ()
    %67 = tpu.concatenate %34, %66 in 2 : vector<1x8x32xf32>, vector<1x8x32xf32> -> vector<1x8x64xf32>
    %c0_24 = arith.constant 0 : index
    %c0_25 = arith.constant 0 : index
    %c0_26 = arith.constant 0 : index
    %68 = vector.load %arg6[%c0_24, %c0_25, %c0_26] : memref<1x8x64xf32, #tpu.memory_space<vmem>>, vector<1x8x64xf32>
    tpu.vector_store %arg6[%c0_24, %c0_25, %c0_26], %67 {strides = array<i32>} : memref<1x8x64xf32, #tpu.memory_space<vmem>>, vector<1x8x64xf32>,
    return
  }
  func.func @transform_0(%arg0: i32) -> (i32, i32, i32) {
    %c0_i32 = arith.constant 0 : i32
    %c0_i32_0 = arith.constant 0 : i32
    %c0_i32_1 = arith.constant 0 : i32
    return %arg0, %c0_i32, %c0_i32_0 : i32, i32, i32
  }
  func.func @transform_1(%arg0: i32) -> (i32, i32, i32) {
    %c0_i32 = arith.constant 0 : i32
    %c0_i32_0 = arith.constant 0 : i32
    %c0_i32_1 = arith.constant 0 : i32
    return %arg0, %c0_i32, %c0_i32_0 : i32, i32, i32
  }
  func.func @transform_2(%arg0: i32) -> (i32, i32) {
    %c0_i32 = arith.constant 0 : i32
    %c0_i32_0 = arith.constant 0 : i32
    %c0_i32_1 = arith.constant 0 : i32
    return %c0_i32, %c0_i32_0 : i32, i32
  }
  func.func @transform_3(%arg0: i32) -> (i32, i32) {
    %c0_i32 = arith.constant 0 : i32
    %c0_i32_0 = arith.constant 0 : i32
    %c0_i32_1 = arith.constant 0 : i32
    return %c0_i32, %c0_i32_0 : i32, i32
  }
  func.func @transform_4(%arg0: i32) -> (i32, i32, i32) {
    %c0_i32 = arith.constant 0 : i32
    %c0_i32_0 = arith.constant 0 : i32
    %c0_i32_1 = arith.constant 0 : i32
    return %arg0, %c0_i32, %c0_i32_0 : i32, i32, i32
  }
  func.func @transform_5(%arg0: i32) -> (i32, i32, i32) {
    %c0_i32 = arith.constant 0 : i32
    %c0_i32_0 = arith.constant 0 : i32
    %c0_i32_1 = arith.constant 0 : i32
    return %arg0, %c0_i32, %c0_i32_0 : i32, i32, i32
  }
}

</mosaic_0001>

<llo_original>
// kernel: tpu_custom_call.1
$region0: #{tpu_custom_call.1}
  #allocation0 [shape = 'u32[]', space=smem, size = 0x4, offset = 0x4, fixed_abs, tag = 'smem constant byte address 0x4 - core index']
  #allocation1 [shape = 'u32[72,128]{1,0:T(1,128)}', space=vmem, size = 0x9000, scoped, tag = 'internal scratch']
  %s0 = inlined_call_operand.hbm [shape: bf16[2,8,32], index: 0, kind: input, shape index: {}]
  %s1 = inlined_call_operand.hbm [shape: bf16[2,8,32], index: 1, kind: input, shape index: {}]
  %s2 = inlined_call_operand.hbm [shape: bf16[32,384], index: 2, kind: input, shape index: {}]
  %s3 = inlined_call_operand.hbm [shape: bf16[32,384], index: 3, kind: input, shape index: {}]
  %s4 = inlined_call_operand.vmem [shape: f32[2,1,8], index: 4, kind: input, shape index: {}]
  %s5 = inlined_call_operand.hbm [shape: f32[2,8,64], index: 5, kind: output, shape index: {}]
  %s6 = sld [smem:[#allocation0]]
  $region69: #{tpu_custom_call.1} parent=0
    _
  %s8 = ssub.s32 1, %s6
  %s9 = scalar_select 0, %s8, %s6
  $region1: #{tpu_custom_call.1} parent=0
    #allocation2 [shape = 'u8[4096]{0}', space=vmem, size = 0x1000, scoped, tag = 'input window, operand 0']
    #allocation3 [shape = 's32[2]{0}', space=sflag, size = 0x8, scoped, tag = 'scoped memory for tpu_custom_call.1']
    #allocation4 [shape = 's32[2]{0}', space=sflag, size = 0x8, scoped, tag = 'scoped memory for tpu_custom_call.1']
    #allocation5 [shape = 'u8[4096]{0}', space=vmem, size = 0x1000, scoped, tag = 'input window, operand 1']
    #allocation6 [shape = 's32[2]{0}', space=sflag, size = 0x8, scoped, tag = 'scoped memory for tpu_custom_call.1']
    #allocation7 [shape = 'u8[24576]{0}', space=vmem, size = 0x6000, scoped, tag = 'input window, operand 2, single buffered']
    #allocation8 [shape = 'u8[24576]{0}', space=vmem, size = 0x6000, scoped, tag = 'input window, operand 3, single buffered']
    #allocation9 [shape = 's32[1]{0}', space=sflag, size = 0x4, scoped, tag = 'scoped memory for tpu_custom_call.1']
    #allocation10 [shape = 'u8[8192]{0}', space=vmem, size = 0x2000, scoped, tag = 'output window, operand 0']
    %10 = vsyncpa [#allocation3], 0
    %s11 = scalar_lea.sflag [#allocation3], 1
    %12 = vsyncpa %s11, 0
    %13 = vsyncpa [#allocation6], 0
    %s14 = scalar_lea.sflag [#allocation6], 1
    %15 = vsyncpa %s14, 0
    %16 = vsyncpa [#allocation9], 0
    %17 = vsyncpa [#allocation4], 0
    %s18 = scalar_lea.sflag [#allocation4], 1
    %19 = vsyncpa %s18, 0
    loop: start=0, step=1, limit=4
    $region2: #{tpu_custom_call.1} parent=1 // loop_pre_header
      _
    $region3: #{tpu_custom_call.1} parent=1 // loop_header
      %s21 = sphi 0, %s25
      %p22 = scmp.ge.s32.totalorder %s21, 4
      %s31 = sphi 0, %s33
      %s34 = sphi 0, %s31
      %s35 = sphi 0, %s34
      %s51 = sphi 0, %s35
      %s57 = sphi 0, %s59
      %s60 = sphi 0, %s57
      %s61 = sphi 0, %s60
      %s77 = sphi 0, %s61
      %s81 = sphi 0, %s81
      %s83 = sphi 0, %s81
      %s84 = sphi 0, %s83
      %s98 = sphi 0, %s84
      %s102 = sphi 0, %s102
      %s104 = sphi 0, %s102
      %s105 = sphi 0, %s104
      %s119 = sphi 0, %s105
      %s125 = sphi 0, %s127
      %s128 = sphi 0, %s125
      %s129 = sphi 0, %s128
      %s145 = sphi 0, %s129
      %s151 = sphi 0, %s153
      %s154 = sphi 0, %s151
      %s155 = sphi 0, %s154
      %s171 = sphi 0, %s155
    $region4: #{tpu_custom_call.1} parent=1 // loop_header_branch
      %24 = sbr.rel (%p22) target = $region8
    $region5: #{tpu_custom_call.1} parent=1 // loop_body
      %s26 = ssub.s32 %s21, 1
      %s27 = ssub.s32 %s21, 2
      %s28 = sadd.s32 %s21, 1
      %s29 = ssub.s32 %s21, %s28
      %p30 = scmp.eq.s32.totalorder %s29, 0
      %s32 = sadd.s32 %s31, 1
      %s33 = scalar_select %p30, %s31, %s32
      %p36 = pneg %p30
      %p37 = scmp.eq.s32.totalorder %s21, 1
      %p38 = por %p36, %p37
      %p39 = scmp.ne.s32.totalorder %s31, %s34
      %p40 = scmp.eq.s32.totalorder %s21, 0
      %p41 = por %p39, %p40
      %p42 = scmp.ne.s32.totalorder %s31, %s34
      %p43 = scmp.eq.s32.totalorder %s26, 1
      %p44 = por %p42, %p43
      %p45 = scmp.ne.s32.totalorder %s34, %s35
      %p46 = scmp.eq.s32.totalorder %s26, 0
      %p47 = por %p45, %p46
      %p48 = scmp.ne.s32.totalorder %s34, %s35
      %p49 = scmp.eq.s32.totalorder %s27, 1
      %p50 = por %p48, %p49
      %p52 = scmp.ne.s32.totalorder %s35, %s51
      %p53 = scmp.eq.s32.totalorder %s27, 0
      %p54 = por %p52, %p53
      %s55 = ssub.s32 %s21, %s28
      %p56 = scmp.eq.s32.totalorder %s55, 0
      %s58 = sadd.s32 %s57, 1
      %s59 = scalar_select %p56, %s57, %s58
      %p62 = pneg %p56
      %p63 = scmp.eq.s32.totalorder %s21, 1
      %p64 = por %p62, %p63
      %p65 = scmp.ne.s32.totalorder %s57, %s60
      %p66 = scmp.eq.s32.totalorder %s21, 0
      %p67 = por %p65, %p66
      %p68 = scmp.ne.s32.totalorder %s57, %s60
      %p69 = scmp.eq.s32.totalorder %s26, 1
      %p70 = por %p68, %p69
      %p71 = scmp.ne.s32.totalorder %s60, %s61
      %p72 = scmp.eq.s32.totalorder %s26, 0
      %p73 = por %p71, %p72
      %p74 = scmp.ne.s32.totalorder %s60, %s61
      %p75 = scmp.eq.s32.totalorder %s27, 1
      %p76 = por %p74, %p75
      %p78 = scmp.ne.s32.totalorder %s61, %s77
      %p79 = scmp.eq.s32.totalorder %s27, 0
      %p80 = por %p78, %p79
      %s82 = sadd.s32 %s81, 1
      %p85 = scmp.eq.s32.totalorder %s21, 1
      %p86 = scmp.ne.s32.totalorder %s81, %s83
      %p87 = scmp.eq.s32.totalorder %s21, 0
      %p88 = por %p86, %p87
      %p89 = scmp.ne.s32.totalorder %s81, %s83
      %p90 = scmp.eq.s32.totalorder %s26, 1
      %p91 = por %p89, %p90
      %p92 = scmp.ne.s32.totalorder %s83, %s84
      %p93 = scmp.eq.s32.totalorder %s26, 0
      %p94 = por %p92, %p93
      %p95 = scmp.ne.s32.totalorder %s83, %s84
      %p96 = scmp.eq.s32.totalorder %s27, 1
      %p97 = por %p95, %p96
      %p99 = scmp.ne.s32.totalorder %s84, %s98
      %p100 = scmp.eq.s32.totalorder %s27, 0
      %p101 = por %p99, %p100
      %s103 = sadd.s32 %s102, 1
      %p106 = scmp.eq.s32.totalorder %s21, 1
      %p107 = scmp.ne.s32.totalorder %s102, %s104
      %p108 = scmp.eq.s32.totalorder %s21, 0
      %p109 = por %p107, %p108
      %p110 = scmp.ne.s32.totalorder %s102, %s104
      %p111 = scmp.eq.s32.totalorder %s26, 1
      %p112 = por %p110, %p111
      %p113 = scmp.ne.s32.totalorder %s104, %s105
      %p114 = scmp.eq.s32.totalorder %s26, 0
      %p115 = por %p113, %p114
      %p116 = scmp.ne.s32.totalorder %s104, %s105
      %p117 = scmp.eq.s32.totalorder %s27, 1
      %p118 = por %p116, %p117
      %p120 = scmp.ne.s32.totalorder %s105, %s119
      %p121 = scmp.eq.s32.totalorder %s27, 0
      %p122 = por %p120, %p121
      %s123 = ssub.s32 %s21, %s28
      %p124 = scmp.eq.s32.totalorder %s123, 0
      %s126 = sadd.s32 %s125, 1
      %s127 = scalar_select %p124, %s125, %s126
      %p130 = pneg %p124
      %p131 = scmp.eq.s32.totalorder %s21, 1
      %p132 = por %p130, %p131
      %p133 = scmp.ne.s32.totalorder %s125, %s128
      %p134 = scmp.eq.s32.totalorder %s21, 0
      %p135 = por %p133, %p134
      %p136 = scmp.ne.s32.totalorder %s125, %s128
      %p137 = scmp.eq.s32.totalorder %s26, 1
      %p138 = por %p136, %p137
      %p139 = scmp.ne.s32.totalorder %s128, %s129
      %p140 = scmp.eq.s32.totalorder %s26, 0
      %p141 = por %p139, %p140
      %p142 = scmp.ne.s32.totalorder %s128, %s129
      %p143 = scmp.eq.s32.totalorder %s27, 1
      %p144 = por %p142, %p143
      %p146 = scmp.ne.s32.totalorder %s129, %s145
      %p147 = scmp.eq.s32.totalorder %s27, 0
      %p148 = por %p146, %p147
      %s149 = ssub.s32 %s21, %s28
      %p150 = scmp.eq.s32.totalorder %s149, 0
      %s152 = sadd.s32 %s151, 1
      %s153 = scalar_select %p150, %s151, %s152
      %p156 = pneg %p150
      %p157 = scmp.eq.s32.totalorder %s21, 1
      %p158 = por %p156, %p157
      %p159 = scmp.ne.s32.totalorder %s151, %s154
      %p160 = scmp.eq.s32.totalorder %s21, 0
      %p161 = por %p159, %p160
      %p162 = scmp.ne.s32.totalorder %s151, %s154
      %p163 = scmp.eq.s32.totalorder %s26, 1
      %p164 = por %p162, %p163
      %p165 = scmp.ne.s32.totalorder %s154, %s155
      %p166 = scmp.eq.s32.totalorder %s26, 0
      %p167 = por %p165, %p166
      %p168 = scmp.ne.s32.totalorder %s154, %s155
      %p169 = scmp.eq.s32.totalorder %s27, 1
      %p170 = por %p168, %p169
      %p172 = scmp.ne.s32.totalorder %s155, %s171
      %p173 = scmp.eq.s32.totalorder %s27, 0
      %p174 = por %p172, %p173
      %p175 = scmp.le.s32.totalorder 1, %s21
      %p176 = scmp.lt.s32.totalorder %s21, 3
      %p177 = pnand %p175, %p176
      %p178 = pneg %p177
      // Predicated region
      $region9: #{tpu_custom_call.1} parent=5 // pred_check
        _
      $region10: #{tpu_custom_call.1} parent=5 // pred_check_branch
        %180 = sbr.rel (%p177) target = $region12
      $region11: #{tpu_custom_call.1} parent=5 // pred_region
        %s181 = ssub.s32 %s21, 1
        // Predicated region
        $region13: #{tpu_custom_call.1} parent=11 // pred_check
          %p182 = pneg %p94
        $region14: #{tpu_custom_call.1} parent=11 // pred_check_branch
          %184 = sbr.rel (%p182) target = $region16
        $region15: #{tpu_custom_call.1} parent=11 // pred_region
          %186 = vsyncadd [#allocation6], 0
          %s187 = sshll.u32 %s2, 4
          %s188 = int_to_ptr.hbm [resolvable:$true] %s187
          %s189 = sshll.u32 [#allocation7], 4
          %s190 = int_to_ptr.vmem [resolvable:$true] %s189
          %195 = dma.hbm_to_vmem [thread:$0]  %s188, 768, %s190, [#allocation6], 192, 192, 12
        $region16: #{tpu_custom_call.1} parent=11 // pred_fallthru
          _
        // Predicated region
        $region17: #{tpu_custom_call.1} parent=11 // pred_check
          %p196 = pneg %p115
        $region18: #{tpu_custom_call.1} parent=11 // pred_check_branch
          %198 = sbr.rel (%p196) target = $region20
        $region19: #{tpu_custom_call.1} parent=11 // pred_region
          %200 = vsyncadd [#allocation9], 0
          %s201 = sshll.u32 %s3, 4
          %s202 = int_to_ptr.hbm [resolvable:$true] %s201
          %s203 = sshll.u32 [#allocation8], 4
          %s204 = int_to_ptr.vmem [resolvable:$true] %s203
          %209 = dma.hbm_to_vmem [thread:$0]  %s202, 768, %s204, [#allocation9], 192, 192, 12
        $region20: #{tpu_custom_call.1} parent=11 // pred_fallthru
          _
      $region12: #{tpu_custom_call.1} parent=5 // pred_fallthru
        _
      %p210 = scmp.lt.s32.totalorder %s21, 2
      // Predicated region
      $region21: #{tpu_custom_call.1} parent=5 // pred_check
        %p211 = pneg %p210
      $region22: #{tpu_custom_call.1} parent=5 // pred_check_branch
        %213 = sbr.rel (%p211) target = $region24
      $region23: #{tpu_custom_call.1} parent=5 // pred_region
        // Predicated region
        $region25: #{tpu_custom_call.1} parent=23 // pred_check
          %p214 = pneg %p41
        $region26: #{tpu_custom_call.1} parent=23 // pred_check_branch
          %216 = sbr.rel (%p214) target = $region28
        $region27: #{tpu_custom_call.1} parent=23 // pred_region
          %s217 = sand.u32 %s31, 1
          %s218 = scalar_lea.sflag [#allocation3], %s217
          %s219 = sand.u32 %s31, 1
          %s220 = smul.addr %s219, 4
          %s221 = scalar_lea.vmem [#allocation2], %s220
          %223 = vsyncadd %s218, 0
          %s224 = smul.addr %s21, 4
          %s225 = scalar_lea.hbm %s0, %s224
          %s227 = sshll.u32 %s225, 4
          %s228 = int_to_ptr.hbm [resolvable:$true] %s227
          %s229 = sshll.u32 %s221, 4
          %s230 = int_to_ptr.vmem [resolvable:$true] %s229
          %232 = dma.hbm_to_vmem [thread:$0]  %s228, 64, %s230, %s218
        $region28: #{tpu_custom_call.1} parent=23 // pred_fallthru
          _
        // Predicated region
        $region29: #{tpu_custom_call.1} parent=23 // pred_check
          %p233 = pneg %p67
        $region30: #{tpu_custom_call.1} parent=23 // pred_check_branch
          %235 = sbr.rel (%p233) target = $region32
        $region31: #{tpu_custom_call.1} parent=23 // pred_region
          %s236 = sand.u32 %s21, 1
          %s237 = scalar_lea.sflag [#allocation6], %s236
          %s238 = sand.u32 %s57, 1
          %s239 = smul.addr %s238, 4
          %s240 = scalar_lea.vmem [#allocation5], %s239
          %242 = vsyncadd %s237, 0
          %s243 = smul.addr %s21, 4
          %s244 = scalar_lea.hbm %s1, %s243
          %s246 = sshll.u32 %s244, 4
          %s247 = int_to_ptr.hbm [resolvable:$true] %s246
          %s248 = sshll.u32 %s240, 4
          %s249 = int_to_ptr.vmem [resolvable:$true] %s248
          %251 = dma.hbm_to_vmem [thread:$0]  %s247, 64, %s249, %s237
        $region32: #{tpu_custom_call.1} parent=23 // pred_fallthru
          _
        // Predicated region
        $region33: #{tpu_custom_call.1} parent=23 // pred_check
          %p252 = pneg %p135
        $region34: #{tpu_custom_call.1} parent=23 // pred_check_branch
          %254 = sbr.rel (%p252) target = $region36
        $region35: #{tpu_custom_call.1} parent=23 // pred_region
          %p255 = scmp.lt.s32.totalorder %s21, 1
          %s256 = scalar_select %p255, %s21, 1
          %s257 = scalar_lea.vmem %s4, %s256
        $region36: #{tpu_custom_call.1} parent=23 // pred_fallthru
          _
      $region24: #{tpu_custom_call.1} parent=5 // pred_fallthru
        _
      %p258 = scmp.le.s32.totalorder 1, %s21
      %p259 = scmp.lt.s32.totalorder %s21, 3
      %p260 = pnand %p258, %p259
      %p261 = pneg %p260
      // Predicated region
      $region37: #{tpu_custom_call.1} parent=5 // pred_check
        _
      $region38: #{tpu_custom_call.1} parent=5 // pred_check_branch
        %263 = sbr.rel (%p260) target = $region40
      $region39: #{tpu_custom_call.1} parent=5 // pred_region
        %s264 = ssub.s32 %s21, 1
        %s265 = sand.u32 %s34, 1
        %s266 = scalar_lea.sflag [#allocation3], %s265
        %s267 = sand.u32 %s34, 1
        %s268 = smul.addr %s267, 4
        %s269 = scalar_lea.vmem [#allocation2], %s268
        // Predicated region
        $region41: #{tpu_custom_call.1} parent=39 // pred_check
          %p270 = pneg %p47
        $region42: #{tpu_custom_call.1} parent=39 // pred_check_branch
          %272 = sbr.rel (%p270) target = $region44
        $region43: #{tpu_custom_call.1} parent=39 // pred_region
          %274 = dma.done %s266, 64
        $region44: #{tpu_custom_call.1} parent=39 // pred_fallthru
          _
        %s275 = sand.u32 %s26, 1
        %s276 = scalar_lea.sflag [#allocation6], %s275
        %s277 = sand.u32 %s60, 1
        %s278 = smul.addr %s277, 4
        %s279 = scalar_lea.vmem [#allocation5], %s278
        // Predicated region
        $region45: #{tpu_custom_call.1} parent=39 // pred_check
          %p280 = pneg %p73
        $region46: #{tpu_custom_call.1} parent=39 // pred_check_branch
          %282 = sbr.rel (%p280) target = $region48
        $region47: #{tpu_custom_call.1} parent=39 // pred_region
          %284 = dma.done %s276, 64
        $region48: #{tpu_custom_call.1} parent=39 // pred_fallthru
          _
        // Predicated region
        $region49: #{tpu_custom_call.1} parent=39 // pred_check
          %p285 = pneg %p94
        $region50: #{tpu_custom_call.1} parent=39 // pred_check_branch
          %287 = sbr.rel (%p285) target = $region52
        $region51: #{tpu_custom_call.1} parent=39 // pred_region
          %289 = dma.done [#allocation6], 768
        $region52: #{tpu_custom_call.1} parent=39 // pred_fallthru
          _
        // Predicated region
        $region53: #{tpu_custom_call.1} parent=39 // pred_check
          %p290 = pneg %p115
        $region54: #{tpu_custom_call.1} parent=39 // pred_check_branch
          %292 = sbr.rel (%p290) target = $region56
        $region55: #{tpu_custom_call.1} parent=39 // pred_region
          %294 = dma.done [#allocation9], 768
        $region56: #{tpu_custom_call.1} parent=39 // pred_fallthru
          _
        %s295 = sand.u32 %s34, 1
        %s296 = scalar_lea.sflag [#allocation3], %s295
        %s297 = sand.u32 %s34, 1
        %s298 = smul.addr %s297, 4
        %s299 = scalar_lea.vmem [#allocation2], %s298
        %p300 = pneg %p47
        %p301 = pneg %p44
        %s302 = sand.u32 %s26, 1
        %s303 = scalar_lea.sflag [#allocation6], %s302
        %s304 = sand.u32 %s60, 1
        %s305 = smul.addr %s304, 4
        %s306 = scalar_lea.vmem [#allocation5], %s305
        %p307 = pneg %p73
        %p308 = pneg %p70
        %p309 = pneg %p94
        %p310 = pneg %p91
        %p311 = pneg %p115
        %p312 = pneg %p112
        %p313 = scmp.lt.s32.totalorder %s26, 1
        %s314 = scalar_select %p313, %s26, 1
        %s315 = scalar_lea.vmem %s4, %s314
        %p316 = pneg %p141
        %p317 = pneg %p138
        %p318 = pneg %p167
        %p319 = pneg %p164
        %s320 = sand.u32 %s154, 1
        %s321 = scalar_lea.sflag [#allocation4], %s320
        %s322 = sand.u32 %s154, 1
        %s323 = smul.addr %s322, 8
        %s324 = scalar_lea.vmem [#allocation10], %s323
        %p325 = scmp.lt.s32.totalorder %s26, 1
        %s326 = scalar_select %p325, %s26, 1
        %s327 = scalar_lea.vmem %s4, %s326
        %v329 = vld [vmem:[%s327] sm:$0x1]
        %vm330 = vcmp.gt.f32.partialorder %v329, 0.5
        %v331 = vld [vmem:[%s269] sm:$0xf]
        %v332 = vld [vmem:[#allocation7] sm:$0xff]
        %v333 = vld [vmem:[#allocation7 + $0x8] sm:$0xf]
        %v334 = vld [vmem:[#allocation7 + $0xc] sm:$0xff]
        %v335 = vld [vmem:[#allocation7 + $0x14] sm:$0xf]
        %v336 = vld [vmem:[#allocation7 + $0x18] sm:$0xff]
        %v337 = vld [vmem:[#allocation7 + $0x20] sm:$0xf]
        %v338 = vld [vmem:[#allocation7 + $0x24] sm:$0xff]
        %v339 = vld [vmem:[#allocation7 + $0x2c] sm:$0xf]
        %v348 = vunpack.c.l.b16 %v332
        %v349 = vunpack.c.h.b16 %v332
        %v350 = vunpack.c.l.b16 %v333
        %v351 = vunpack.c.l.b16 %v334
        %v352 = vunpack.c.h.b16 %v334
        %v353 = vunpack.c.l.b16 %v335
        %v354 = vunpack.c.l.b16 %v336
        %v355 = vunpack.c.h.b16 %v336
        %v356 = vunpack.c.l.b16 %v337
        %v357 = vunpack.c.l.b16 %v338
        %v358 = vunpack.c.h.b16 %v338
        %v359 = vunpack.c.l.b16 %v339
        %v360 = vpack.c.b16 %v351, %v348
        %v361 = vpack.c.b16 %v352, %v349
        %v362 = vpack.c.b16 %v353, %v350
        %v363 = vpack.c.b16 %v357, %v354
        %v364 = vpack.c.b16 %v358, %v355
        %v365 = vpack.c.b16 %v359, %v356
        %vm372 = vcmask 261120
        %v374 = vsel %vm372, %v331, 0
        %376 = vmatpush.bf16.msra.mxu0 0
        %377 = vmatpush.bf16.msra.mxu0 0
        %378 = vmatpush.bf16.msra.mxu0 0
        %379 = vmatpush.bf16.msra.mxu0 0
        %380 = vmatpush.bf16.msra.mxu0 0
        %381 = vmatpush.bf16.msra.mxu0 0
        %382 = vmatpush.bf16.msra.mxu0 %v363
        %383 = vmatpush.bf16.msra.mxu0 %v360
        %384 = vmatmul.bf16.gmra.mxu0 %v374
        %v385 = vpop.f32.mrf.mxu0
        %v386 = vadd.f32 0.0, %v385
        %v387 = vpop.f32.mrf.mxu0
        %388 = vdwg.mxu0
        %389 = vmatpush.bf16.msra.mxu0 0
        %390 = vmatpush.bf16.msra.mxu0 0
        %391 = vmatpush.bf16.msra.mxu0 0
        %392 = vmatpush.bf16.msra.mxu0 0
        %393 = vmatpush.bf16.msra.mxu0 0
        %394 = vmatpush.bf16.msra.mxu0 0
        %395 = vmatpush.bf16.msra.mxu0 %v364
        %396 = vmatpush.bf16.msra.mxu0 %v361
        %397 = vmatmul.bf16.gmra.mxu0 %v374
        %v398 = vpop.f32.mrf.mxu0
        %v399 = vadd.f32 0.0, %v398
        %v400 = vpop.f32.mrf.mxu0
        %401 = vdwg.mxu0
        %402 = vmatpush.bf16.msra.mxu0 0
        %403 = vmatpush.bf16.msra.mxu0 0
        %404 = vmatpush.bf16.msra.mxu0 0
        %405 = vmatpush.bf16.msra.mxu0 0
        %406 = vmatpush.bf16.msra.mxu0 0
        %407 = vmatpush.bf16.msra.mxu0 0
        %408 = vmatpush.bf16.msra.mxu0 %v365
        %409 = vmatpush.bf16.msra.mxu0 %v362
        %410 = vmatmul.bf16.gmra.mxu0 %v374
        %v411 = vpop.f32.mrf.mxu0
        %v412 = vadd.f32 0.0, %v411
        %v413 = vpop.f32.mrf.mxu0
        %414 = vdwg.mxu0
        %v415 = vpack.c.bf16 %v386, %v386
        %v416 = vpack.c.bf16 %v399, %v399
        %v417 = vpack.c.bf16 %v412, %v412
        %v420 = vunpack.c.l.b16 %v415
        %v421 = vunpack.c.l.b16 %v416
        %v422 = vpack.c.b16 %v421, %v420
        %424 = vmatpush.bf16.xpose.msra.mxu0 0
        %425 = vmatpush.bf16.xpose.msra.mxu0 0
        %426 = vmatpush.bf16.xpose.msra.mxu0 0
        %427 = vmatpush.bf16.xpose.msra.mxu0 0
        %428 = vmatpush.bf16.xpose.msra.mxu0 0
        %429 = vmatpush.bf16.xpose.msra.mxu0 0
        %430 = vmatpush.bf16.xpose.msra.mxu0 0
        %431 = vmatpush.bf16.xpose.msra.mxu0 %v417
        %432 = vmatmul.bf16.gmra.mxu0 %v422
        %v433 = vpop.f32.mrf.mxu0
        %v434 = vadd.f32 0.0, %v433
        %v435 = vpop.f32.mrf.mxu0
        %v436 = vadd.f32 0.0, %v435
        %437 = vdwg.mxu0
        %v438 = vsel %vm330, 1, 0
        %v439 = vperm.slane %v438, 0
        %vm440 = vcmp.eq.s32.totalorder %v439, 1
        %v441 = vsel %vm440, %v434, -3.4028235e+38
        %v442 = vsel %vm440, %v436, -3.4028235e+38
        %vm443 = vcmask 64512
        %v444 = vsel %vm443, %v441, -inf
        %445 = vmax.xlane.f32.xlu0 %v444
        %v446 = vpop.xlane.xlu0 %445
        %v447 = vsel %vm443, %v442, -inf
        %448 = vmax.xlane.f32.xlu0 %v447
        %v449 = vpop.xlane.xlu0 %448
        %v450 = vsub.f32 %v441, %v446
        %v451 = vsub.f32 %v442, %v449
        %v452 = vmul.f32 %v450, 1.442695
        %v453 = vpow.pop %v452
        %v454 = vmul.f32 %v451, 1.442695
        %v455 = vpow.pop %v454
        %v456 = vsel %vm443, %v453, 0.0
        %457 = vadd.xlane.f32.xlu0 %v456
        %v458 = vpop.xlane.xlu0 %457
        %v459 = vsel %vm443, %v455, 0.0
        %460 = vadd.xlane.f32.xlu0 %v459
        %v461 = vpop.xlane.xlu0 %460
        %v462 = vrcp.pop %v458
        %v463 = vmul.f32 %v458, %v462
        %v464 = vsub.f32 1.0, %v463
        %v465 = vmul.f32 %v462, %v464
        %v466 = vadd.f32 %v462, %v465
        %vm467 = vweird.f32 %v458
        %vm468 = vweird.f32 %v462
        %vm469 = vmor %vm467, %vm468
        %v470 = vsel %vm469, %v462, %v466
        %v471 = vand.u32 2147483647, %v458
        %vm472 = vcmp.eq.f32.partialorder %v471, 8.507059e+37
        %v473 = vand.u32 %v458, 2147483648
        %v474 = vor.u32 1.1754944e-38, %v473
        %v475 = vsel %vm472, %v474, %v470
        %v476 = vmul.f32 %v453, %v475
        %v477 = vrcp.pop %v461
        %v478 = vmul.f32 %v461, %v477
        %v479 = vsub.f32 1.0, %v478
        %v480 = vmul.f32 %v477, %v479
        %v481 = vadd.f32 %v477, %v480
        %vm482 = vweird.f32 %v461
        %vm483 = vweird.f32 %v477
        %vm484 = vmor %vm482, %vm483
        %v485 = vsel %vm484, %v477, %v481
        %v486 = vand.u32 2147483647, %v461
        %vm487 = vcmp.eq.f32.partialorder %v486, 8.507059e+37
        %v488 = vand.u32 %v461, 2147483648
        %v489 = vor.u32 1.1754944e-38, %v488
        %v490 = vsel %vm487, %v489, %v485
        %v491 = vmul.f32 %v455, %v490
        %v492 = vadd.f32 %v476, %v491
        %v493 = vpack.c.bf16 %v492, %v492
        %v495 = vsel %vm443, %v493, 0
        %vm497 = vcmask 1043456
        %v498 = vsel %vm497, %v331, 0
        %500 = vmatpush.bf16.msra.mxu0 0
        %501 = vmatpush.bf16.msra.mxu0 0
        %502 = vmatpush.bf16.msra.mxu0 0
        %503 = vmatpush.bf16.msra.mxu0 0
        %504 = vmatpush.bf16.msra.mxu0 0
        %505 = vmatpush.bf16.msra.mxu0 0
        %506 = vmatpush.bf16.msra.mxu0 0
        %507 = vmatpush.bf16.msra.mxu0 %v498
        %508 = vmatmul.bf16.gmra.mxu0 %v495
        %v509 = vpop.f32.mrf.mxu0
        %v510 = vadd.f32 0.0, %v509
        %v511 = vpop.f32.mrf.mxu0
        %512 = vdwg.mxu0
        %v513 = vld [vmem:[%s279] sm:$0xf]
        %v514 = vld [vmem:[#allocation8] sm:$0xff]
        %v515 = vld [vmem:[#allocation8 + $0x8] sm:$0xf]
        %v516 = vld [vmem:[#allocation8 + $0xc] sm:$0xff]
        %v517 = vld [vmem:[#allocation8 + $0x14] sm:$0xf]
        %v518 = vld [vmem:[#allocation8 + $0x18] sm:$0xff]
        %v519 = vld [vmem:[#allocation8 + $0x20] sm:$0xf]
        %v520 = vld [vmem:[#allocation8 + $0x24] sm:$0xff]
        %v521 = vld [vmem:[#allocation8 + $0x2c] sm:$0xf]
        %v530 = vunpack.c.l.b16 %v514
        %v531 = vunpack.c.h.b16 %v514
        %v532 = vunpack.c.l.b16 %v515
        %v533 = vunpack.c.l.b16 %v516
        %v534 = vunpack.c.h.b16 %v516
        %v535 = vunpack.c.l.b16 %v517
        %v536 = vunpack.c.l.b16 %v518
        %v537 = vunpack.c.h.b16 %v518
        %v538 = vunpack.c.l.b16 %v519
        %v539 = vunpack.c.l.b16 %v520
        %v540 = vunpack.c.h.b16 %v520
        %v541 = vunpack.c.l.b16 %v521
        %v542 = vpack.c.b16 %v533, %v530
        %v543 = vpack.c.b16 %v534, %v531
        %v544 = vpack.c.b16 %v535, %v532
        %v545 = vpack.c.b16 %v539, %v536
        %v546 = vpack.c.b16 %v540, %v537
        %v547 = vpack.c.b16 %v541, %v538
        %v555 = vsel %vm372, %v513, 0
        %557 = vmatpush.bf16.msra.mxu0 0
        %558 = vmatpush.bf16.msra.mxu0 0
        %559 = vmatpush.bf16.msra.mxu0 0
        %560 = vmatpush.bf16.msra.mxu0 0
        %561 = vmatpush.bf16.msra.mxu0 0
        %562 = vmatpush.bf16.msra.mxu0 0
        %563 = vmatpush.bf16.msra.mxu0 %v545
        %564 = vmatpush.bf16.msra.mxu0 %v542
        %565 = vmatmul.bf16.gmra.mxu0 %v555
        %v566 = vpop.f32.mrf.mxu0
        %v567 = vadd.f32 0.0, %v566
        %v568 = vpop.f32.mrf.mxu0
        %569 = vdwg.mxu0
        %570 = vmatpush.bf16.msra.mxu0 0
        %571 = vmatpush.bf16.msra.mxu0 0
        %572 = vmatpush.bf16.msra.mxu0 0
        %573 = vmatpush.bf16.msra.mxu0 0
        %574 = vmatpush.bf16.msra.mxu0 0
        %575 = vmatpush.bf16.msra.mxu0 0
        %576 = vmatpush.bf16.msra.mxu0 %v546
        %577 = vmatpush.bf16.msra.mxu0 %v543
        %578 = vmatmul.bf16.gmra.mxu0 %v555
        %v579 = vpop.f32.mrf.mxu0
        %v580 = vadd.f32 0.0, %v579
        %v581 = vpop.f32.mrf.mxu0
        %582 = vdwg.mxu0
        %583 = vmatpush.bf16.msra.mxu0 0
        %584 = vmatpush.bf16.msra.mxu0 0
        %585 = vmatpush.bf16.msra.mxu0 0
        %586 = vmatpush.bf16.msra.mxu0 0
        %587 = vmatpush.bf16.msra.mxu0 0
        %588 = vmatpush.bf16.msra.mxu0 0
        %589 = vmatpush.bf16.msra.mxu0 %v547
        %590 = vmatpush.bf16.msra.mxu0 %v544
        %591 = vmatmul.bf16.gmra.mxu0 %v555
        %v592 = vpop.f32.mrf.mxu0
        %v593 = vadd.f32 0.0, %v592
        %v594 = vpop.f32.mrf.mxu0
        %595 = vdwg.mxu0
        %v596 = vpack.c.bf16 %v567, %v567
        %v597 = vpack.c.bf16 %v580, %v580
        %v598 = vpack.c.bf16 %v593, %v593
        %v601 = vunpack.c.l.b16 %v596
        %v602 = vunpack.c.l.b16 %v597
        %v603 = vpack.c.b16 %v602, %v601
        %605 = vmatpush.bf16.xpose.msra.mxu0 0
        %606 = vmatpush.bf16.xpose.msra.mxu0 0
        %607 = vmatpush.bf16.xpose.msra.mxu0 0
        %608 = vmatpush.bf16.xpose.msra.mxu0 0
        %609 = vmatpush.bf16.xpose.msra.mxu0 0
        %610 = vmatpush.bf16.xpose.msra.mxu0 0
        %611 = vmatpush.bf16.xpose.msra.mxu0 0
        %612 = vmatpush.bf16.xpose.msra.mxu0 %v598
        %613 = vmatmul.bf16.gmra.mxu0 %v603
        %v614 = vpop.f32.mrf.mxu0
        %v615 = vadd.f32 0.0, %v614
        %v616 = vpop.f32.mrf.mxu0
        %v617 = vadd.f32 0.0, %v616
        %618 = vdwg.mxu0
        %v619 = vsel %vm440, %v615, -3.4028235e+38
        %v620 = vsel %vm440, %v617, -3.4028235e+38
        %v621 = vsel %vm443, %v619, -inf
        %622 = vmax.xlane.f32.xlu0 %v621
        %v623 = vpop.xlane.xlu0 %622
        %v624 = vsel %vm443, %v620, -inf
        %625 = vmax.xlane.f32.xlu0 %v624
        %v626 = vpop.xlane.xlu0 %625
        %v627 = vsub.f32 %v619, %v623
        %v628 = vsub.f32 %v620, %v626
        %v629 = vmul.f32 %v627, 1.442695
        %v630 = vpow.pop %v629
        %v631 = vmul.f32 %v628, 1.442695
        %v632 = vpow.pop %v631
        %v633 = vsel %vm443, %v630, 0.0
        %634 = vadd.xlane.f32.xlu0 %v633
        %v635 = vpop.xlane.xlu0 %634
        %v636 = vsel %vm443, %v632, 0.0
        %637 = vadd.xlane.f32.xlu0 %v636
        %v638 = vpop.xlane.xlu0 %637
        %v639 = vrcp.pop %v635
        %v640 = vmul.f32 %v635, %v639
        %v641 = vsub.f32 1.0, %v640
        %v642 = vmul.f32 %v639, %v641
        %v643 = vadd.f32 %v639, %v642
        %vm644 = vweird.f32 %v635
        %vm645 = vweird.f32 %v639
        %vm646 = vmor %vm644, %vm645
        %v647 = vsel %vm646, %v639, %v643
        %v648 = vand.u32 2147483647, %v635
        %vm649 = vcmp.eq.f32.partialorder %v648, 8.507059e+37
        %v650 = vand.u32 %v635, 2147483648
        %v651 = vor.u32 1.1754944e-38, %v650
        %v652 = vsel %vm649, %v651, %v647
        %v653 = vmul.f32 %v630, %v652
        %v654 = vrcp.pop %v638
        %v655 = vmul.f32 %v638, %v654
        %v656 = vsub.f32 1.0, %v655
        %v657 = vmul.f32 %v654, %v656
        %v658 = vadd.f32 %v654, %v657
        %vm659 = vweird.f32 %v638
        %vm660 = vweird.f32 %v654
        %vm661 = vmor %vm659, %vm660
        %v662 = vsel %vm661, %v654, %v658
        %v663 = vand.u32 2147483647, %v638
        %vm664 = vcmp.eq.f32.partialorder %v663, 8.507059e+37
        %v665 = vand.u32 %v638, 2147483648
        %v666 = vor.u32 1.1754944e-38, %v665
        %v667 = vsel %vm664, %v666, %v662
        %v668 = vmul.f32 %v632, %v667
        %v669 = vadd.f32 %v653, %v668
        %v670 = vpack.c.bf16 %v669, %v669
        %v672 = vsel %vm443, %v670, 0
        %v674 = vsel %vm497, %v513, 0
        %676 = vmatpush.bf16.msra.mxu0 0
        %677 = vmatpush.bf16.msra.mxu0 0
        %678 = vmatpush.bf16.msra.mxu0 0
        %679 = vmatpush.bf16.msra.mxu0 0
        %680 = vmatpush.bf16.msra.mxu0 0
        %681 = vmatpush.bf16.msra.mxu0 0
        %682 = vmatpush.bf16.msra.mxu0 0
        %683 = vmatpush.bf16.msra.mxu0 %v674
        %684 = vmatmul.bf16.gmra.mxu0 %v672
        %v685 = vpop.f32.mrf.mxu0
        %v686 = vadd.f32 0.0, %v685
        %v687 = vpop.f32.mrf.mxu0
        %688 = vdwg.mxu0
        %690 = vrot.lane.b32.xlu0 %v686, 32
        %v691 = vpop.permute.xlu0 %690
        %v693 = vsel %vm372, %v510, %v691
        %vm694 = vcmask 523264
        %695 = vst.msk [vmem:[%s324] sm:$0xff] %vm694, %v693
        %s696 = sand.u32 %s154, 1
        %s697 = scalar_lea.sflag [#allocation4], %s696
        %s698 = sand.u32 %s154, 1
        %s699 = smul.addr %s698, 8
        %s700 = scalar_lea.vmem [#allocation10], %s699
        // Predicated region
        $region57: #{tpu_custom_call.1} parent=39 // pred_check
          %p701 = pneg %p164
        $region58: #{tpu_custom_call.1} parent=39 // pred_check_branch
          %703 = sbr.rel (%p701) target = $region60
        $region59: #{tpu_custom_call.1} parent=39 // pred_region
          %705 = vsyncadd %s697, 0
          %s706 = smul.addr %s26, 8
          %s707 = scalar_lea.hbm %s5, %s706
          %s709 = sshll.u32 %s700, 4
          %s710 = int_to_ptr.vmem [resolvable:$true] %s709
          %s711 = sshll.u32 %s707, 4
          %s712 = int_to_ptr.hbm [resolvable:$true] %s711
          %714 = dma.vmem_to_hbm [thread:$0]  %s710, 128, %s712, %s697
        $region60: #{tpu_custom_call.1} parent=39 // pred_fallthru
          _
      $region40: #{tpu_custom_call.1} parent=5 // pred_fallthru
        _
      %p715 = scmp.le.s32.totalorder 2, %s21
      // Predicated region
      $region61: #{tpu_custom_call.1} parent=5 // pred_check
        %p716 = pneg %p715
      $region62: #{tpu_custom_call.1} parent=5 // pred_check_branch
        %718 = sbr.rel (%p716) target = $region64
      $region63: #{tpu_custom_call.1} parent=5 // pred_region
        %s719 = ssub.s32 %s21, 2
        // Predicated region
        $region65: #{tpu_custom_call.1} parent=63 // pred_check
          %p720 = pneg %p170
        $region66: #{tpu_custom_call.1} parent=63 // pred_check_branch
          %722 = sbr.rel (%p720) target = $region68
        $region67: #{tpu_custom_call.1} parent=63 // pred_region
          %s723 = sand.u32 %s155, 1
          %s724 = scalar_lea.sflag [#allocation4], %s723
          %s725 = sand.u32 %s155, 1
          %s726 = smul.addr %s725, 8
          %s727 = scalar_lea.vmem [#allocation10], %s726
          %729 = dma.done %s724, 128
        $region68: #{tpu_custom_call.1} parent=63 // pred_fallthru
          _
      $region64: #{tpu_custom_call.1} parent=5 // pred_fallthru
        _
    $region6: #{tpu_custom_call.1} parent=1 // loop_footer
      %s25 = sadd.s32 1, %s21
    $region7: #{tpu_custom_call.1} parent=1 // loop_footer_branch
      %20 = sbr.rel target = $region3
    $region8: #{tpu_custom_call.1} parent=1 // loop_exit
      _
    %730 = vsyncpa [#allocation3], 1
    %s731 = scalar_lea.sflag [#allocation3], 1
    %732 = vsyncpa %s731, 1
    %733 = vsyncpa [#allocation6], 1
    %s734 = scalar_lea.sflag [#allocation6], 1
    %735 = vsyncpa %s734, 1
    %736 = vsyncpa [#allocation9], 1
    %737 = vsyncpa [#allocation4], 1
    %s738 = scalar_lea.sflag [#allocation4], 1
    %739 = vsyncpa %s738, 1

</llo_original>
